<compile_context>
chip_gen: v7x
topology: tpu7x:2x2x1
jax: 0.10.0
libtpu: 0.0.40
codegen_flags: <defaults>
</compile_context>

<pallas_src>
import functools

import numpy as np
import jax
import jax.numpy as jnp
from jax.experimental import pallas as pl
from jax.experimental.pallas import tpu as pltpu

SCALES = (1, 2, 3, 6)
BN_EPS = 1e-5
_SEG = np.cumsum([0] + [s * s for s in SCALES])  # [0, 1, 5, 14, 50]
NPOOL = int(_SEG[-1])                            # 50
NPOOL_PAD = 128                                  # lane padding of the 50-wide axis in VMEM


def _round_up(x, m):
    return ((x + m - 1) // m) * m


# ---------------------------------------------------------------------------
# Host-side construction of the (small, dense) operator matrices — cached.
# ---------------------------------------------------------------------------
def adaptive_pool_matrix(out_size, in_size):
    """Row-stochastic matrix implementing nn.AdaptiveAvgPool along one axis."""
    m = np.zeros((out_size, in_size), np.float32)
    for i in range(out_size):
        start = (i * in_size) // out_size
        end = int(np.ceil((i + 1) * in_size / out_size))
        m[i, start:end] = 1.0 / (end - start)
    return m


def bilinear_upsample_matrix(out_size, in_size):
    """F.interpolate(mode='bilinear', align_corners=False) along one axis."""
    m = np.zeros((out_size, in_size), np.float32)
    scale = in_size / out_size
    for d in range(out_size):
        src = max((d + 0.5) * scale - 0.5, 0.0)
        i0 = min(int(np.floor(src)), in_size - 1)
        i1 = min(i0 + 1, in_size - 1)
        lam = src - i0
        m[d, i0] += 1.0 - lam
        m[d, i1] += lam
    return m


@functools.lru_cache(maxsize=None)
def _pool_upsample_operators(H, W):
    """Stacked pooling / upsampling operators for all scales.

    Returns:
      p_cat_t: (H*W, 50)  pooled = x_flat @ p_cat_t   (per channel)
      u_cat  : (50, H*W)  up     = y @ u_cat
    """
    p_blocks, u_blocks = [], []
    for s in SCALES:
        p = np.kron(adaptive_pool_matrix(s, H), adaptive_pool_matrix(s, W))          # (s*s, HW)
        u = np.kron(bilinear_upsample_matrix(H, s), bilinear_upsample_matrix(W, s))  # (HW, s*s)
        p_blocks.append(p)
        u_blocks.append(u.T)
    p_cat_t = np.ascontiguousarray(np.concatenate(p_blocks, axis=0).T).astype(np.float32)
    u_cat = np.concatenate(u_blocks, axis=0).astype(np.float32)
    return p_cat_t, u_cat


@functools.lru_cache(maxsize=None)
def _branch_mask(c4):
    """(4*C4, 50) 0/1 mask selecting the block-diagonal of the merged conv output."""
    m = np.zeros((len(SCALES) * c4, NPOOL), np.float32)
    for k in range(len(SCALES)):
        m[k * c4:(k + 1) * c4, _SEG[k]:_SEG[k + 1]] = 1.0
    return m


# ---------------------------------------------------------------------------
# Generation-aware VMEM budgeting and HW-tile selection.
# ---------------------------------------------------------------------------
def _vmem_capacity_bytes():
    try:
        return int(pltpu.get_tpu_info().vmem_capacity_bytes)
    except Exception:
        return 64 * 1024 * 1024   # conservative fallback: v7x per-TC VMEM


def _choose_hw_tile(HW, C, N, act_bytes, op_bytes, vmem_cap):
    """Largest multiple-of-128 HW tile whose full (double-buffered, lane-padded)
    pipeline footprint fits inside ~55% of the per-core VMEM capacity."""
    out_c = 2 * C
    perlane_k1 = 2 * (C * act_bytes + NPOOL_PAD * op_bytes)
    perlane_k2 = 2 * (C * act_bytes + NPOOL_PAD * op_bytes + out_c * act_bytes)
    fixed_k1 = 2 * N * C * NPOOL_PAD * 4            # resident (N, C, 50) f32 accumulator
    fixed_k2 = 2 * C * NPOOL_PAD * op_bytes         # conv-output operand block
    budget = int(0.55 * vmem_cap)
    thw = (budget - max(fixed_k1, fixed_k2)) // max(perlane_k1, perlane_k2)
    thw = max(128, (thw // 128) * 128)
    return int(min(thw, _round_up(HW, 128), 8192))


def _vmem_limit(need_bytes, vmem_cap):
    hi = int(0.85 * vmem_cap)                        # leave headroom for compiler scratch
    return int(min(max(int(need_bytes), 32 * 1024 * 1024), hi))


# ---------------------------------------------------------------------------
# Kernel 1: adaptive avg-pool, accumulated over HW tiles into (N, C, 50).
# ---------------------------------------------------------------------------
def _pool_kernel(x_ref, p_ref, pooled_ref, *, hw, thw):
    t = pl.program_id(0)
    n = pl.program_id(1)

    @pl.when((t == 0) & (n == 0))
    def _init():
        pooled_ref[...] = jnp.zeros_like(pooled_ref)

    x = x_ref[0]                                    # (C, thw), activation dtype
    if hw % thw != 0:                               # remainder tile: zero out-of-bounds lanes
        lane = jax.lax.broadcasted_iota(jnp.int32, (1, thw), 1)
        x = jnp.where(lane < hw - t * thw, x, jnp.zeros_like(x))
    pooled_ref[n] = pooled_ref[n] + jnp.dot(
        x, p_ref[...], preferred_element_type=jnp.float32)


# ---------------------------------------------------------------------------
# Kernel 2: bilinear upsample of all branches + channel-concat via slice stores.
# ---------------------------------------------------------------------------
def _upsample_concat_kernel(x_ref, y_ref, u_ref, out_ref):
    c = x_ref.shape[1]
    up = jnp.dot(y_ref[0], u_ref[...], preferred_element_type=jnp.float32)  # (4*C4, thw)
    out_ref[0, :c, :] = x_ref[0]                    # passthrough of x
    out_ref[0, c:, :] = up.astype(out_ref.dtype)    # up_1 | up_2 | up_3 | up_6


# ---------------------------------------------------------------------------
# Public wrapper (jit'ed): NCHW in, NCHW out (channels = 2 * in_dim).
# ---------------------------------------------------------------------------
def _ppm_forward_impl(x_nchw, conv_ws, bn_params):
    N, C, H, W = x_nchw.shape
    C4 = C // 4
    nbr = len(SCALES) * C4                           # == C when C % 4 == 0
    out_c = C + nbr
    HW = H * W
    act_dtype = x_nchw.dtype
    act_bytes = np.dtype(act_dtype).itemsize
    op_dtype = act_dtype                             # feed the MXU in the activation dtype
    op_bytes = np.dtype(op_dtype).itemsize

    vmem_cap = _vmem_capacity_bytes()
    thw = _choose_hw_tile(HW, C, N, act_bytes, op_bytes, vmem_cap)
    T = (HW + thw - 1) // thw
    hw_pad = T * thw

    # Operators (host-built, cached by (H, W)); zero-padded so out-of-bounds lanes of
    # the last tile contribute nothing; cast to the activation dtype.
    p_np, u_np = _pool_upsample_operators(H, W)
    if hw_pad > HW:
        p_np = np.pad(p_np, ((0, hw_pad - HW), (0, 0)))
        u_np = np.pad(u_np, ((0, 0), (0, hw_pad - HW)))
    p_cat_t = jnp.asarray(p_np, dtype=op_dtype)      # (hw_pad, 50)
    u_cat = jnp.asarray(u_np, dtype=op_dtype)        # (50, hw_pad)
    mask = jnp.asarray(_branch_mask(C4))             # (nbr, 50) f32

    # Fold eval-mode BatchNorm into the stacked 1x1 conv weights (f32, used in XLA only).
    w_rows, b_rows = [], []
    for si in range(len(SCALES)):
        gamma, beta, mean, var = [p.astype(jnp.float32) for p in bn_params[si]]
        inv = gamma / jnp.sqrt(var + BN_EPS)
        w_rows.append(conv_ws[si].astype(jnp.float32) * inv[:, None])   # (C4, C)
        b_rows.append((beta - mean * inv)[:, None])                     # (C4, 1)
    w_cat = jnp.concatenate(w_rows, axis=0)          # (nbr, C)
    b_cat = jnp.concatenate(b_rows, axis=0)          # (nbr, 1)

    x = x_nchw.reshape(N, C, HW)                     # free reshape

    # --- kernel 1: pooled accumulation over HW tiles -> (N, C, 50) f32 ---
    k1_need = (2 * (C * thw * act_bytes + thw * NPOOL_PAD * op_bytes)
               + 2 * N * C * NPOOL_PAD * 4 + (4 << 20))
    pooled = pl.pallas_call(
        functools.partial(_pool_kernel, hw=HW, thw=thw),
        out_shape=jax.ShapeDtypeStruct((N, C, NPOOL), jnp.float32),
        grid=(T, N),   # HW tile outer, batch inner -> P tile DMA'd once, never re-streamed
        in_specs=[
            pl.BlockSpec((1, C, thw), lambda t, n: (n, 0, t)),
            pl.BlockSpec((thw, NPOOL), lambda t, n: (t, 0)),
        ],
        out_specs=pl.BlockSpec((N, C, NPOOL), lambda t, n: (0, 0, 0)),
        compiler_params=pltpu.CompilerParams(
            dimension_semantics=("arbitrary", "arbitrary"),
            vmem_limit_bytes=_vmem_limit(k1_need, vmem_cap)),
    )(x, p_cat_t)
    # TODO(synk): on v7x with N == 1, split the HW reduction across a leading "parallel"
    # axis of size 2 (two partial accumulators summed below) so both TensorCores get work.

    # --- tiny folded conv + BN(eval) + ReLU + cross-scale mask in plain XLA ---
    z = jnp.einsum('oc,ncp->nop', w_cat, pooled) + b_cat[None]      # (N, nbr, 50) f32
    y = (jnp.maximum(z, 0.0) * mask[None]).astype(op_dtype)         # (N, nbr, 50)

    # --- kernel 2: HW-tiled upsample + concatenated output (lane-dense stores) ---
    k2_need = (2 * (C * thw * act_bytes + NPOOL_PAD * thw * op_bytes
                    + out_c * thw * act_bytes + C * NPOOL_PAD * op_bytes)
               + (4 << 20))
    out_flat = pl.pallas_call(
        _upsample_concat_kernel,
        out_shape=jax.ShapeDtypeStruct((N, out_c, HW), act_dtype),
        grid=(N, T),
        in_specs=[
            pl.BlockSpec((1, C, thw), lambda n, t: (n, 0, t)),
            pl.BlockSpec((1, nbr, NPOOL), lambda n, t: (n, 0, 0)),
            pl.BlockSpec((NPOOL, thw), lambda n, t: (0, t)),
        ],
        out_specs=pl.BlockSpec((1, out_c, thw), lambda n, t: (n, 0, t)),
        compiler_params=pltpu.CompilerParams(
            dimension_semantics=("parallel", "parallel"),
            vmem_limit_bytes=_vmem_limit(k2_need, vmem_cap)),
    )(x, y, u_cat)

    return out_flat.reshape(N, out_c, H, W)          # free reshape back to NCHW


ppm_forward = jax.jit(_ppm_forward_impl)


# ---------------------------------------------------------------------------
# Pure-JAX reference (NCHW) used only to verify the kernel.
# ---------------------------------------------------------------------------
def ppm_reference(x_nchw, conv_ws, bn_params):
    N, C, H, W = x_nchw.shape
    x = x_nchw.astype(jnp.float32)
    outs = [x]
    for si, s in enumerate(SCALES):
        ph = jnp.asarray(adaptive_pool_matrix(s, H))
        pw = jnp.asarray(adaptive_pool_matrix(s, W))
        uh = jnp.asarray(bilinear_upsample_matrix(H, s))
        uw = jnp.asarray(bilinear_upsample_matrix(W, s))
        pooled = jnp.einsum('ih,jw,nchw->ncij', ph, pw, x)
        y = jnp.einsum('oc,ncij->noij', conv_ws[si], pooled)
        gamma, beta, mean, var = bn_params[si]
        inv = gamma / jnp.sqrt(var + BN_EPS)
        y = (y - mean[None, :, None, None]) * inv[None, :, None, None] + beta[None, :, None, None]
        y = jnp.maximum(y, 0.0)
        outs.append(jnp.einsum('hi,wj,noij->nohw', uh, uw, y))
    return jnp.concatenate(outs, axis=1)


if __name__ == "__main__":
    key = jax.random.PRNGKey(0)
    N, C, H, W = 2, 8, 16, 16           # in_dim = 8  ->  out channels = 2 * in_dim
    C4 = C // 4

    k_x, *ks = jax.random.split(key, 1 + 4 * len(SCALES))
    x = jax.random.normal(k_x, (N, C, H, W), jnp.float32)

    conv_ws, bn_params = [], []
    it = iter(ks)
    for _s in SCALES:
        kw, kg, kb, km = next(it), next(it), next(it), next(it)
        conv_ws.append(jax.random.normal(kw, (C4, C), jnp.float32) * 0.2)   # 1x1 conv weight
        gamma = 1.0 + 0.1 * jax.random.normal(kg, (C4,), jnp.float32)
        beta = 0.1 * jax.random.normal(kb, (C4,), jnp.float32)
        mean = 0.1 * jax.random.normal(km, (C4,), jnp.float32)
        var = 0.9 * jnp.ones((C4,), jnp.float32)
        bn_params.append((gamma, beta, mean, var))

    # f32, evenly tiled spatial size.
    out = jax.block_until_ready(ppm_forward(x, conv_ws, bn_params))
    ref = ppm_reference(x, conv_ws, bn_params)
    assert out.shape == (N, 2 * C, H, W), out.shape
    np.testing.assert_allclose(np.asarray(out), np.asarray(ref), rtol=1e-4, atol=1e-4)

    # f32, spatial size exercising the remainder-tile (HW not a multiple of 128) path.
    x_odd = jax.random.normal(jax.random.PRNGKey(1), (N, C, 10, 10), jnp.float32)
    out_odd = jax.block_until_ready(ppm_forward(x_odd, conv_ws, bn_params))
    ref_odd = ppm_reference(x_odd, conv_ws, bn_params)
    np.testing.assert_allclose(np.asarray(out_odd), np.asarray(ref_odd), rtol=1e-4, atol=1e-4)

    # bf16 activations: operators follow the activation dtype (native MXU path).
    x_bf = x.astype(jnp.bfloat16)
    out_bf = jax.block_until_ready(ppm_forward(x_bf, conv_ws, bn_params))
    ref_bf = ppm_reference(x_bf.astype(jnp.float32), conv_ws, bn_params)
    np.testing.assert_allclose(np.asarray(out_bf.astype(jnp.float32)), np.asarray(ref_bf),
                               rtol=5e-2, atol=5e-2)

    print("KERNEL_OK")
</pallas_src>

<mosaic_0001>
module attributes {stable_mosaic.version = 11 : i64} {
  func.func @_pool_kernel(%arg0: i32, %arg1: i32, %arg2: memref<1x8x256xf32, #tpu.memory_space<vmem>>, %arg3: memref<256x50xf32, #tpu.memory_space<vmem>>, %arg4: memref<2x8x50xf32, #tpu.memory_space<vmem>>) attributes {dimension_semantics = [#tpu.dimension_semantics<arbitrary>, #tpu.dimension_semantics<arbitrary>], iteration_bounds = array<i64: 1, 2>, scalar_prefetch = 0 : i64, scratch_operands = 0 : i64, tpu.core_type = #tpu.core_type<tc>, window_params = [{transform_indices = @transform_0, window_bounds = array<i64: 1, 8, 256>}, {transform_indices = @transform_1, window_bounds = array<i64: 256, 50>}, {pipeline_mode = #tpu.pipeline_mode<synchronous>, transform_indices = @transform_2, window_bounds = array<i64: 2, 8, 50>}]} {
    %c0_i32 = arith.constant 0 : i32
    %0 = arith.cmpi eq, %arg0, %c0_i32 : i32
    %c0_i32_0 = arith.constant 0 : i32
    %1 = arith.cmpi eq, %arg1, %c0_i32_0 : i32
    %2 = arith.andi %0, %1 : i1
    %3 = arith.extui %2 : i1 to i32
    %c0_i32_1 = arith.constant 0 : i32
    %4 = arith.cmpi ne, %3, %c0_i32_1 : i32
    scf.if %4 {
      %cst_10 = arith.constant 0.000000e+00 : f32
      %17 = vector.broadcast %cst_10 : f32 to vector<2x8x50xf32>
      %c0_11 = arith.constant 0 : index
      %c0_12 = arith.constant 0 : index
      %c0_13 = arith.constant 0 : index
      %18 = vector.load %arg4[%c0_11, %c0_12, %c0_13] : memref<2x8x50xf32, #tpu.memory_space<vmem>>, vector<2x8x50xf32>
      tpu.vector_store %arg4[%c0_11, %c0_12, %c0_13], %17 {strides = array<i32>} : memref<2x8x50xf32, #tpu.memory_space<vmem>>, vector<2x8x50xf32>,
    } else {
    }
    %c0 = arith.constant 0 : index
    %c0_2 = arith.constant 0 : index
    %c0_3 = arith.constant 0 : index
    %5 = vector.load %arg2[%c0, %c0_2, %c0_3] : memref<1x8x256xf32, #tpu.memory_space<vmem>>, vector<1x8x256xf32>
    %6 = vector.shape_cast %5 : vector<1x8x256xf32> to vector<8x256xf32>
    %7 = arith.index_cast %arg1 : i32 to index
    %c0_4 = arith.constant 0 : index
    %c0_5 = arith.constant 0 : index
    %8 = vector.load %arg4[%7, %c0_4, %c0_5] : memref<2x8x50xf32, #tpu.memory_space<vmem>>, vector<1x8x50xf32>
    %9 = vector.shape_cast %8 : vector<1x8x50xf32> to vector<8x50xf32>
    %c0_6 = arith.constant 0 : index
    %c0_7 = arith.constant 0 : index
    %10 = vector.load %arg3[%c0_6, %c0_7] : memref<256x50xf32, #tpu.memory_space<vmem>>, vector<256x50xf32>
    %cst = arith.constant dense<0.000000e+00> : vector<8x50xf32>
    %11 = tpu.matmul %6, %10, %cst {dimension_numbers = #tpu.dot_dimension_numbers<[1], [0], [0], [1], [0, 0, 1, 1], [], []>} : vector<8x256xf32>, vector<256x50xf32>, vector<8x50xf32> -> vector<8x50xf32>
    %12 = arith.addf %9, %11 : vector<8x50xf32>
    %13 = arith.index_cast %arg1 : i32 to index
    %c0_8 = arith.constant 0 : index
    %c0_9 = arith.constant 0 : index
    %14 = vector.load %arg4[%13, %c0_8, %c0_9] : memref<2x8x50xf32, #tpu.memory_space<vmem>>, vector<1x8x50xf32>
    %15 = vector.shape_cast %14 : vector<1x8x50xf32> to vector<8x50xf32>
    %16 = vector.shape_cast %12 : vector<8x50xf32> to vector<1x8x50xf32>
    tpu.vector_store %arg4[%13, %c0_8, %c0_9], %16 {strides = array<i32>} : memref<2x8x50xf32, #tpu.memory_space<vmem>>, vector<1x8x50xf32>,
    return
  }
  func.func @transform_0(%arg0: i32, %arg1: i32) -> (i32, i32, i32) {
    %c0_i32 = arith.constant 0 : i32
    %c0_i32_0 = arith.constant 0 : i32
    return %arg1, %c0_i32, %arg0 : i32, i32, i32
  }
  func.func @transform_1(%arg0: i32, %arg1: i32) -> (i32, i32) {
    %c0_i32 = arith.constant 0 : i32
    %c0_i32_0 = arith.constant 0 : i32
    return %arg0, %c0_i32 : i32, i32
  }
  func.func @transform_2(%arg0: i32, %arg1: i32) -> (i32, i32, i32) {
    %c0_i32 = arith.constant 0 : i32
    %c0_i32_0 = arith.constant 0 : i32
    %c0_i32_1 = arith.constant 0 : i32
    %c0_i32_2 = arith.constant 0 : i32
    return %c0_i32, %c0_i32_0, %c0_i32_1 : i32, i32, i32
  }
}

module attributes {stable_mosaic.version = 11 : i64} {
  func.func @_upsample_concat_kernel(%arg0: i32, %arg1: i32, %arg2: memref<1x8x256xf32, #tpu.memory_space<vmem>>, %arg3: memref<1x8x50xf32, #tpu.memory_space<vmem>>, %arg4: memref<50x256xf32, #tpu.memory_space<vmem>>, %arg5: memref<1x16x256xf32, #tpu.memory_space<vmem>>) attributes {dimension_semantics = [#tpu.dimension_semantics<parallel>, #tpu.dimension_semantics<parallel>], iteration_bounds = array<i64: 2, 1>, scalar_prefetch = 0 : i64, scratch_operands = 0 : i64, tpu.core_type = #tpu.core_type<tc>, window_params = [{transform_indices = @transform_0, window_bounds = array<i64: 1, 8, 256>}, {transform_indices = @transform_1, window_bounds = array<i64: 1, 8, 50>}, {transform_indices = @transform_2, window_bounds = array<i64: 50, 256>}, {transform_indices = @transform_3, window_bounds = array<i64: 1, 16, 256>}]} {
    %c0 = arith.constant 0 : index
    %c0_0 = arith.constant 0 : index
    %c0_1 = arith.constant 0 : index
    %0 = vector.load %arg3[%c0, %c0_0, %c0_1] : memref<1x8x50xf32, #tpu.memory_space<vmem>>, vector<1x8x50xf32>
    %1 = vector.shape_cast %0 : vector<1x8x50xf32> to vector<8x50xf32>
    %c0_2 = arith.constant 0 : index
    %c0_3 = arith.constant 0 : index
    %2 = vector.load %arg4[%c0_2, %c0_3] : memref<50x256xf32, #tpu.memory_space<vmem>>, vector<50x256xf32>
    %cst = arith.constant dense<0.000000e+00> : vector<8x256xf32>
    %3 = tpu.matmul %1, %2, %cst {dimension_numbers = #tpu.dot_dimension_numbers<[1], [0], [0], [1], [0, 0, 1, 1], [], []>} : vector<8x50xf32>, vector<50x256xf32>, vector<8x256xf32> -> vector<8x256xf32>
    %c0_4 = arith.constant 0 : index
    %c0_5 = arith.constant 0 : index
    %c0_6 = arith.constant 0 : index
    %4 = vector.load %arg2[%c0_4, %c0_5, %c0_6] : memref<1x8x256xf32, #tpu.memory_space<vmem>>, vector<1x8x256xf32>
    %5 = vector.shape_cast %4 : vector<1x8x256xf32> to vector<8x256xf32>
    %c0_7 = arith.constant 0 : index
    %c0_8 = arith.constant 0 : index
    %c0_9 = arith.constant 0 : index
    %6 = vector.load %arg5[%c0_7, %c0_8, %c0_9] : memref<1x16x256xf32, #tpu.memory_space<vmem>>, vector<1x8x256xf32>
    %7 = vector.shape_cast %6 : vector<1x8x256xf32> to vector<8x256xf32>
    %8 = vector.shape_cast %5 : vector<8x256xf32> to vector<1x8x256xf32>
    tpu.vector_store %arg5[%c0_7, %c0_8, %c0_9], %8 {strides = array<i32>} : memref<1x16x256xf32, #tpu.memory_space<vmem>>, vector<1x8x256xf32>,
    %c0_10 = arith.constant 0 : index
    %c8 = arith.constant 8 : index
    %c0_11 = arith.constant 0 : index
    %9 = vector.load %arg5[%c0_10, %c8, %c0_11] : memref<1x16x256xf32, #tpu.memory_space<vmem>>, vector<1x8x256xf32>
    %10 = vector.shape_cast %9 : vector<1x8x256xf32> to vector<8x256xf32>
    %11 = vector.shape_cast %3 : vector<8x256xf32> to vector<1x8x256xf32>
    tpu.vector_store %arg5[%c0_10, %c8, %c0_11], %11 {strides = array<i32>} : memref<1x16x256xf32, #tpu.memory_space<vmem>>, vector<1x8x256xf32>,
    return
  }
  func.func @transform_0(%arg0: i32, %arg1: i32) -> (i32, i32, i32) {
    %c0_i32 = arith.constant 0 : i32
    %c0_i32_0 = arith.constant 0 : i32
    return %arg0, %c0_i32, %arg1 : i32, i32, i32
  }
  func.func @transform_1(%arg0: i32, %arg1: i32) -> (i32, i32, i32) {
    %c0_i32 = arith.constant 0 : i32
    %c0_i32_0 = arith.constant 0 : i32
    %c0_i32_1 = arith.constant 0 : i32
    return %arg0, %c0_i32, %c0_i32_0 : i32, i32, i32
  }
  func.func @transform_2(%arg0: i32, %arg1: i32) -> (i32, i32) {
    %c0_i32 = arith.constant 0 : i32
    %c0_i32_0 = arith.constant 0 : i32
    return %c0_i32, %arg1 : i32, i32
  }
  func.func @transform_3(%arg0: i32, %arg1: i32) -> (i32, i32, i32) {
    %c0_i32 = arith.constant 0 : i32
    %c0_i32_0 = arith.constant 0 : i32
    return %arg0, %c0_i32, %arg1 : i32, i32, i32
  }
}

</mosaic_0001>

<llo_original>
// kernel: _ppm_forward_impl.3
$region0: #{_ppm_forward_impl.3}
  #allocation0 [shape = 'u32[]', space=smem, size = 0x4, offset = 0x4, fixed_abs, tag = 'smem constant byte address 0x4 - core index']
  #allocation1 [shape = 'u32[144,128]{1,0:T(1,128)}', space=vmem, size = 0x12000, scoped, tag = 'internal scratch']
  %s0 = inlined_call_operand.vmem [shape: f32[2,8,256], index: 0, kind: input, shape index: {}]
  %s1 = inlined_call_operand.vmem [shape: f32[2,8,50], index: 1, kind: input, shape index: {}]
  %s2 = inlined_call_operand.vmem [shape: f32[50,256], index: 2, kind: input, shape index: {}]
  %s3 = inlined_call_operand.vmem [shape: f32[2,16,256], index: 3, kind: output, shape index: {}]
  %s4 = sld [smem:[#allocation0]]
  $region45: #{_ppm_forward_impl.3} parent=0
    _
  %s6 = ssub.s32 1, %s4
  %s7 = scalar_select 0, %s6, %s4
  loop: start=0, step=1, limit=4
  $region2: #{_ppm_forward_impl.3} parent=0 // loop_pre_header
    _
  $region3: #{_ppm_forward_impl.3} parent=0 // loop_header
    %s9 = sphi 0, %s13
    %p10 = scmp.ge.s32.totalorder %s9, 4
    %s16 = sphi 0, %s28
    %s17 = sphi 0, %s24
    %s18 = sphi 0, %s16
    %s19 = sphi 0, %s17
    %s20 = sphi 0, %s18
    %s21 = sphi 0, %s19
    %s33 = sphi 0, %s35
    %s36 = sphi 0, %s33
    %s37 = sphi 0, %s36
    %s53 = sphi 0, %s37
    %s59 = sphi 0, %s61
    %s62 = sphi 0, %s59
    %s63 = sphi 0, %s62
    %s79 = sphi 0, %s63
    %s85 = sphi 0, %s87
    %s88 = sphi 0, %s85
    %s89 = sphi 0, %s88
    %s105 = sphi 0, %s89
    %s113 = sphi 0, %s115
    %s116 = sphi 0, %s113
    %s117 = sphi 0, %s116
    %s133 = sphi 0, %s117
  $region4: #{_ppm_forward_impl.3} parent=0 // loop_header_branch
    %12 = sbr.rel (%p10) target = $region8
  $region5: #{_ppm_forward_impl.3} parent=0 // loop_body
    %s14 = ssub.s32 %s9, 1
    %s15 = ssub.s32 %s9, 2
    %s22 = sadd.s32 1, %s17
    %p23 = scmp.ge.s32.totalorder %s22, 1
    %s24 = scalar_select %p23, 0, %s22
    %s25 = sadd.s32 1, %s16
    %s26 = scalar_select %p23, %s25, %s16
    %p27 = scmp.ge.s32.totalorder %s26, 2
    %s28 = scalar_select %p27, 0, %s26
    %s29 = ssub.s32 %s16, %s28
    %s30 = ssub.s32 %s17, %s24
    %s31 = sor.u32 %s29, %s30
    %p32 = scmp.eq.s32.totalorder %s31, 0
    %s34 = sadd.s32 %s33, 1
    %s35 = scalar_select %p32, %s33, %s34
    %p38 = pneg %p32
    %p39 = scmp.eq.s32.totalorder %s9, 1
    %p40 = por %p38, %p39
    %p41 = scmp.ne.s32.totalorder %s33, %s36
    %p42 = scmp.eq.s32.totalorder %s9, 0
    %p43 = por %p41, %p42
    %p44 = scmp.ne.s32.totalorder %s33, %s36
    %p45 = scmp.eq.s32.totalorder %s14, 1
    %p46 = por %p44, %p45
    %p47 = scmp.ne.s32.totalorder %s36, %s37
    %p48 = scmp.eq.s32.totalorder %s14, 0
    %p49 = por %p47, %p48
    %p50 = scmp.ne.s32.totalorder %s36, %s37
    %p51 = scmp.eq.s32.totalorder %s15, 1
    %p52 = por %p50, %p51
    %p54 = scmp.ne.s32.totalorder %s37, %s53
    %p55 = scmp.eq.s32.totalorder %s15, 0
    %p56 = por %p54, %p55
    %s57 = ssub.s32 %s16, %s28
    %p58 = scmp.eq.s32.totalorder %s57, 0
    %s60 = sadd.s32 %s59, 1
    %s61 = scalar_select %p58, %s59, %s60
    %p64 = pneg %p58
    %p65 = scmp.eq.s32.totalorder %s9, 1
    %p66 = por %p64, %p65
    %p67 = scmp.ne.s32.totalorder %s59, %s62
    %p68 = scmp.eq.s32.totalorder %s9, 0
    %p69 = por %p67, %p68
    %p70 = scmp.ne.s32.totalorder %s59, %s62
    %p71 = scmp.eq.s32.totalorder %s14, 1
    %p72 = por %p70, %p71
    %p73 = scmp.ne.s32.totalorder %s62, %s63
    %p74 = scmp.eq.s32.totalorder %s14, 0
    %p75 = por %p73, %p74
    %p76 = scmp.ne.s32.totalorder %s62, %s63
    %p77 = scmp.eq.s32.totalorder %s15, 1
    %p78 = por %p76, %p77
    %p80 = scmp.ne.s32.totalorder %s63, %s79
    %p81 = scmp.eq.s32.totalorder %s15, 0
    %p82 = por %p80, %p81
    %s83 = ssub.s32 %s17, %s24
    %p84 = scmp.eq.s32.totalorder %s83, 0
    %s86 = sadd.s32 %s85, 1
    %s87 = scalar_select %p84, %s85, %s86
    %p90 = pneg %p84
    %p91 = scmp.eq.s32.totalorder %s9, 1
    %p92 = por %p90, %p91
    %p93 = scmp.ne.s32.totalorder %s85, %s88
    %p94 = scmp.eq.s32.totalorder %s9, 0
    %p95 = por %p93, %p94
    %p96 = scmp.ne.s32.totalorder %s85, %s88
    %p97 = scmp.eq.s32.totalorder %s14, 1
    %p98 = por %p96, %p97
    %p99 = scmp.ne.s32.totalorder %s88, %s89
    %p100 = scmp.eq.s32.totalorder %s14, 0
    %p101 = por %p99, %p100
    %p102 = scmp.ne.s32.totalorder %s88, %s89
    %p103 = scmp.eq.s32.totalorder %s15, 1
    %p104 = por %p102, %p103
    %p106 = scmp.ne.s32.totalorder %s89, %s105
    %p107 = scmp.eq.s32.totalorder %s15, 0
    %p108 = por %p106, %p107
    %s109 = ssub.s32 %s16, %s28
    %s110 = ssub.s32 %s17, %s24
    %s111 = sor.u32 %s109, %s110
    %p112 = scmp.eq.s32.totalorder %s111, 0
    %s114 = sadd.s32 %s113, 1
    %s115 = scalar_select %p112, %s113, %s114
    %p118 = pneg %p112
    %p119 = scmp.eq.s32.totalorder %s9, 1
    %p120 = por %p118, %p119
    %p121 = scmp.ne.s32.totalorder %s113, %s116
    %p122 = scmp.eq.s32.totalorder %s9, 0
    %p123 = por %p121, %p122
    %p124 = scmp.ne.s32.totalorder %s113, %s116
    %p125 = scmp.eq.s32.totalorder %s14, 1
    %p126 = por %p124, %p125
    %p127 = scmp.ne.s32.totalorder %s116, %s117
    %p128 = scmp.eq.s32.totalorder %s14, 0
    %p129 = por %p127, %p128
    %p130 = scmp.ne.s32.totalorder %s116, %s117
    %p131 = scmp.eq.s32.totalorder %s15, 1
    %p132 = por %p130, %p131
    %p134 = scmp.ne.s32.totalorder %s117, %s133
    %p135 = scmp.eq.s32.totalorder %s15, 0
    %p136 = por %p134, %p135
    %p137 = scmp.le.s32.totalorder 1, %s9
    %p138 = scmp.lt.s32.totalorder %s9, 3
    %p139 = pnand %p137, %p138
    %p140 = pneg %p139
    // Predicated region
    $region9: #{_ppm_forward_impl.3} parent=5 // pred_check
      _
    $region10: #{_ppm_forward_impl.3} parent=5 // pred_check_branch
      %142 = sbr.rel (%p139) target = $region12
    $region11: #{_ppm_forward_impl.3} parent=5 // pred_region
      %s143 = ssub.s32 %s9, 1
      // Predicated region
      $region13: #{_ppm_forward_impl.3} parent=11 // pred_check
        %p144 = pneg %p101
      $region14: #{_ppm_forward_impl.3} parent=11 // pred_check_branch
        %146 = sbr.rel (%p144) target = $region16
      $region15: #{_ppm_forward_impl.3} parent=11 // pred_region
        %s147 = smul.u32 2, %s19
        %p148 = scmp.lt.s32.totalorder %s147, 1
        %s149 = scalar_select %p148, %s147, 1
        %s150 = smul.addr %s149, 8
        %s151 = scalar_lea.vmem %s2, %s150
        %s152 = smul.u32 2, %s19
      $region16: #{_ppm_forward_impl.3} parent=11 // pred_fallthru
        _
    $region12: #{_ppm_forward_impl.3} parent=5 // pred_fallthru
      _
    %p153 = scmp.lt.s32.totalorder %s9, 2
    // Predicated region
    $region17: #{_ppm_forward_impl.3} parent=5 // pred_check
      %p154 = pneg %p153
    $region18: #{_ppm_forward_impl.3} parent=5 // pred_check_branch
      %156 = sbr.rel (%p154) target = $region20
    $region19: #{_ppm_forward_impl.3} parent=5 // pred_region
      // Predicated region
      $region21: #{_ppm_forward_impl.3} parent=19 // pred_check
        %p157 = pneg %p43
      $region22: #{_ppm_forward_impl.3} parent=19 // pred_check_branch
        %159 = sbr.rel (%p157) target = $region24
      $region23: #{_ppm_forward_impl.3} parent=19 // pred_region
        %s160 = smul.u32 2, %s17
        %p161 = scmp.lt.s32.totalorder %s16, 1
        %s162 = scalar_select %p161, %s16, 1
        %p163 = scmp.lt.s32.totalorder %s160, 1
        %s164 = scalar_select %p163, %s160, 1
        %s165 = smul.addr %s162, 2
        %s166 = sadd.s32 %s164, %s165
        %s167 = smul.addr %s166, 8
        %s168 = scalar_lea.vmem %s0, %s167
        %s169 = smul.u32 2, %s17
      $region24: #{_ppm_forward_impl.3} parent=19 // pred_fallthru
        _
      // Predicated region
      $region25: #{_ppm_forward_impl.3} parent=19 // pred_check
        %p170 = pneg %p69
      $region26: #{_ppm_forward_impl.3} parent=19 // pred_check_branch
        %172 = sbr.rel (%p170) target = $region28
      $region27: #{_ppm_forward_impl.3} parent=19 // pred_region
        %p173 = scmp.lt.s32.totalorder %s16, 1
        %s174 = scalar_select %p173, %s16, 1
        %s175 = smul.addr %s174, 8
        %s176 = scalar_lea.vmem %s1, %s175
      $region28: #{_ppm_forward_impl.3} parent=19 // pred_fallthru
        _
    $region20: #{_ppm_forward_impl.3} parent=5 // pred_fallthru
      _
    %p177 = scmp.le.s32.totalorder 1, %s9
    %p178 = scmp.lt.s32.totalorder %s9, 3
    %p179 = pnand %p177, %p178
    %p180 = pneg %p179
    // Predicated region
    $region29: #{_ppm_forward_impl.3} parent=5 // pred_check
      _
    $region30: #{_ppm_forward_impl.3} parent=5 // pred_check_branch
      %182 = sbr.rel (%p179) target = $region32
    $region31: #{_ppm_forward_impl.3} parent=5 // pred_region
      %s183 = ssub.s32 %s9, 1
      %s184 = smul.u32 2, %s19
      %p185 = scmp.lt.s32.totalorder %s18, 1
      %s186 = scalar_select %p185, %s18, 1
      %p187 = scmp.lt.s32.totalorder %s184, 1
      %s188 = scalar_select %p187, %s184, 1
      %s189 = smul.addr %s186, 2
      %s190 = sadd.s32 %s188, %s189
      %s191 = smul.addr %s190, 8
      %s192 = scalar_lea.vmem %s0, %s191
      %p193 = pneg %p49
      %p194 = pneg %p46
      %p195 = scmp.lt.s32.totalorder %s18, 1
      %s196 = scalar_select %p195, %s18, 1
      %s197 = smul.addr %s196, 8
      %s198 = scalar_lea.vmem %s1, %s197
      %p199 = pneg %p75
      %p200 = pneg %p72
      %s201 = smul.u32 2, %s19
      %p202 = scmp.lt.s32.totalorder %s201, 1
      %s203 = scalar_select %p202, %s201, 1
      %s204 = smul.addr %s203, 8
      %s205 = scalar_lea.vmem %s2, %s204
      %p206 = pneg %p101
      %p207 = pneg %p98
      %p208 = pneg %p129
      %p209 = pneg %p126
      %s210 = smul.u32 2, %s19
      %p211 = scmp.lt.s32.totalorder %s18, 1
      %s212 = scalar_select %p211, %s18, 1
      %p213 = scmp.lt.s32.totalorder %s210, 1
      %s214 = scalar_select %p213, %s210, 1
      %s215 = smul.addr %s212, 4
      %s216 = sadd.s32 %s214, %s215
      %s217 = smul.addr %s216, 8
      %s218 = scalar_lea.vmem %s3, %s217
      %s219 = smul.u32 2, %s19
      %p220 = scmp.lt.s32.totalorder %s18, 1
      %s221 = scalar_select %p220, %s18, 1
      %p222 = scmp.lt.s32.totalorder %s219, 1
      %s223 = scalar_select %p222, %s219, 1
      %s224 = smul.addr %s221, 2
      %s225 = sadd.s32 %s223, %s224
      %s226 = smul.addr %s225, 8
      %s227 = scalar_lea.vmem %s0, %s226
      %s228 = smul.u32 2, %s19
      %p229 = scmp.lt.s32.totalorder %s18, 1
      %s230 = scalar_select %p229, %s18, 1
      %s231 = smul.addr %s230, 8
      %s232 = scalar_lea.vmem %s1, %s231
      %s233 = smul.u32 2, %s19
      %p234 = scmp.lt.s32.totalorder %s233, 1
      %s235 = scalar_select %p234, %s233, 1
      %s236 = smul.addr %s235, 8
      %s237 = scalar_lea.vmem %s2, %s236
      %s238 = smul.u32 2, %s19
      %s239 = smul.u32 2, %s19
      %p240 = scmp.lt.s32.totalorder %s18, 1
      %s241 = scalar_select %p240, %s18, 1
      %p242 = scmp.lt.s32.totalorder %s239, 1
      %s243 = scalar_select %p242, %s239, 1
      %s244 = smul.addr %s241, 4
      %s245 = sadd.s32 %s243, %s244
      %s246 = smul.addr %s245, 8
      %s247 = scalar_lea.vmem %s3, %s246
      %s248 = smul.u32 2, %s19
      %v249 = vld [vmem:[%s232] sm:$0xff]
      %v250 = vld [vmem:[%s237] sm:$0xff]
      %v251 = vld [vmem:[%s237 + $0x8] sm:$0xff]
      %v252 = vld [vmem:[%s237 + $0x10] sm:$0xff]
      %v253 = vld [vmem:[%s237 + $0x18] sm:$0xff]
      %v254 = vld [vmem:[%s237 + $0x20] sm:$0xff]
      %v255 = vld [vmem:[%s237 + $0x28] sm:$0xff]
      %v256 = vld [vmem:[%s237 + $0x30] sm:$0xff]
      %v257 = vld [vmem:[%s237 + $0x38] sm:$0xff]
      %v258 = vld [vmem:[%s237 + $0x40] sm:$0xff]
      %v259 = vld [vmem:[%s237 + $0x48] sm:$0xff]
      %v260 = vld [vmem:[%s237 + $0x50] sm:$0xff]
      %v261 = vld [vmem:[%s237 + $0x58] sm:$0xff]
      %v262 = vld [vmem:[%s237 + $0x60] sm:$0x3]
      %v263 = vld [vmem:[%s237 + $0x68] sm:$0x3]
      %vm264 = vcmask 408576
      %v266 = vsel %vm264, %v249, 0
      %vm268 = vcmask 1041408
      %v270 = vsel %vm268, %v262, 0
      %v273 = vsel %vm268, %v263, 0
      %275 = vmatprep.subr.mxu0 %v251
      %276 = vmatpush1.msra.mxu0 %v250
      %277 = vmatprep.subr.mxu0 %v253
      %278 = vmatpush1.msra.mxu0 %v252
      %279 = vmatprep.subr.mxu0 %v255
      %280 = vmatpush1.msra.mxu0 %v254
      %281 = vmatprep.subr.mxu0 %v257
      %282 = vmatpush1.msra.mxu0 %v256
      %283 = vmatprep.subr.mxu0 %v259
      %284 = vmatpush1.msra.mxu0 %v258
      %285 = vmatprep.subr.mxu0 %v261
      %286 = vmatpush1.msra.mxu0 %v260
      %287 = vmatprep.subr.mxu0 %v273
      %288 = vmatpush1.msra.mxu0 %v270
      %289 = vmatprep.subr.mxu0 0.0
      %290 = vmatpush1.msra.mxu0 0.0
      %291 = vmatprep.subr.mxu0 0.0
      %292 = vmatpush1.msra.mxu0 0.0
      %293 = vmatprep.subr.mxu0 0.0
      %294 = vmatpush1.msra.mxu0 0.0
      %295 = vmatprep.subr.mxu0 0.0
      %296 = vmatpush1.msra.mxu0 0.0
      %297 = vmatprep.subr.mxu0 0.0
      %298 = vmatpush1.msra.mxu0 0.0
      %299 = vmatprep.subr.mxu0 0.0
      %300 = vmatpush1.msra.mxu0 0.0
      %301 = vmatprep.subr.mxu0 0.0
      %302 = vmatpush1.msra.mxu0 0.0
      %303 = vmatprep.subr.mxu0 0.0
      %304 = vmatpush1.msra.mxu0 0.0
      %305 = vmatprep.subr.mxu0 0.0
      %306 = vmatpush1.msra.mxu0 0.0
      %307 = vmatprep.subr.mxu0 0.0
      %308 = vmatpush1.msra.mxu0 0.0
      %309 = vmatprep.subr.mxu0 0.0
      %310 = vmatpush1.msra.mxu0 0.0
      %311 = vmatprep.subr.mxu0 0.0
      %312 = vmatpush1.msra.mxu0 0.0
      %313 = vmatprep.subr.mxu0 0.0
      %314 = vmatpush1.msra.mxu0 0.0
      %315 = vmatprep.subr.mxu0 0.0
      %316 = vmatpush1.msra.mxu0 0.0
      %317 = vmatprep.subr.mxu0 0.0
      %318 = vmatpush1.msra.mxu0 0.0
      %319 = vmatprep.subr.mxu0 0.0
      %320 = vmatpush1.msra.mxu0 0.0
      %321 = vmatprep.subr.mxu0 0.0
      %322 = vmatpush1.msra.mxu0 0.0
      %323 = vmatprep.subr.mxu0 0.0
      %324 = vmatpush1.msra.mxu0 0.0
      %325 = vmatprep.subr.mxu0 0.0
      %326 = vmatpush1.msra.mxu0 0.0
      %327 = vmatprep.subr.mxu0 0.0
      %328 = vmatpush1.msra.mxu0 0.0
      %329 = vmatprep.subr.mxu0 0.0
      %330 = vmatpush1.msra.mxu0 0.0
      %331 = vmatprep.subr.mxu0 0.0
      %332 = vmatpush1.msra.mxu0 0.0
      %333 = vmatprep.subr.mxu0 0.0
      %334 = vmatpush1.msra.mxu0 0.0
      %335 = vmatprep.subr.mxu0 0.0
      %336 = vmatpush1.msra.mxu0 0.0
      %337 = vmatprep.subr.mxu0 0.0
      %338 = vmatpush1.msra.mxu0 0.0
      %339 = vmatprep.mubr.f32.mxu0 0.0
      %340 = vmatmul.mubr.f32.gmra.mrb[0].mxu0 %v266
      %v341 = vpop.f32.mrb[0].mxu0
      %v342 = vadd.f32 0.0, %v341
      %v343 = vpop.f32.mrb[0].mxu0
      %v344 = vadd.f32 0.0, %v343
      %345 = vdwg.mxu0
      %v346 = vld [vmem:[%s227] sm:$0xff]
      %v347 = vld [vmem:[%s227 + $0x8] sm:$0xff]
      %348 = vst [vmem:[%s247] sm:$0xff] %v346
      %349 = vst [vmem:[%s247 + $0x8] sm:$0xff] %v347
      %350 = vst [vmem:[%s247 + $0x10] sm:$0xff] %v342
      %351 = vst [vmem:[%s247 + $0x18] sm:$0xff] %v344
      %s352 = smul.u32 2, %s19
      %p353 = scmp.lt.s32.totalorder %s18, 1
      %s354 = scalar_select %p353, %s18, 1
      %p355 = scmp.lt.s32.totalorder %s352, 1
      %s356 = scalar_select %p355, %s352, 1
      %s357 = smul.addr %s354, 4
      %s358 = sadd.s32 %s356, %s357
      %s359 = smul.addr %s358, 8
      %s360 = scalar_lea.vmem %s3, %s359
      // Predicated region
      $region33: #{_ppm_forward_impl.3} parent=31 // pred_check
        %p361 = pneg %p126
      $region34: #{_ppm_forward_impl.3} parent=31 // pred_check_branch
        %363 = sbr.rel (%p361) target = $region36
      $region35: #{_ppm_forward_impl.3} parent=31 // pred_region
        %s364 = smul.u32 2, %s19
      $region36: #{_ppm_forward_impl.3} parent=31 // pred_fallthru
        _
    $region32: #{_ppm_forward_impl.3} parent=5 // pred_fallthru
      _
    %p365 = scmp.le.s32.totalorder 2, %s9
    // Predicated region
    $region37: #{_ppm_forward_impl.3} parent=5 // pred_check
      %p366 = pneg %p365
    $region38: #{_ppm_forward_impl.3} parent=5 // pred_check_branch
      %368 = sbr.rel (%p366) target = $region40
    $region39: #{_ppm_forward_impl.3} parent=5 // pred_region
      %s369 = ssub.s32 %s9, 2
      // Predicated region
      $region41: #{_ppm_forward_impl.3} parent=39 // pred_check
        %p370 = pneg %p132
      $region42: #{_ppm_forward_impl.3} parent=39 // pred_check_branch
        %372 = sbr.rel (%p370) target = $region44
      $region43: #{_ppm_forward_impl.3} parent=39 // pred_region
        %s373 = smul.u32 2, %s21
        %p374 = scmp.lt.s32.totalorder %s20, 1
        %s375 = scalar_select %p374, %s20, 1
        %p376 = scmp.lt.s32.totalorder %s373, 1
        %s377 = scalar_select %p376, %s373, 1
        %s378 = smul.addr %s375, 4
        %s379 = sadd.s32 %s377, %s378
        %s380 = smul.addr %s379, 8
        %s381 = scalar_lea.vmem %s3, %s380
      $region44: #{_ppm_forward_impl.3} parent=39 // pred_fallthru
        _
    $region40: #{_ppm_forward_impl.3} parent=5 // pred_fallthru
      _
  $region6: #{_ppm_forward_impl.3} parent=0 // loop_footer
    %s13 = sadd.s32 1, %s9
  $region7: #{_ppm_forward_impl.3} parent=0 // loop_footer_branch
    %8 = sbr.rel target = $region3
  $region8: #{_ppm_forward_impl.3} parent=0 // loop_exit
    _

// kernel: _ppm_forward_impl.2
$region0: #{_ppm_forward_impl.2}
  #allocation0 [shape = 'u32[]', space=smem, size = 0x4, offset = 0x4, fixed_abs, tag = 'smem constant byte address 0x4 - core index']
  #allocation1 [shape = 'u32[144,128]{1,0:T(1,128)}', space=vmem, size = 0x12000, scoped, tag = 'internal scratch']
  %s0 = inlined_call_operand.vmem [shape: f32[2,8,256], index: 0, kind: input, shape index: {}]
  %s1 = inlined_call_operand.vmem [shape: f32[256,50], index: 1, kind: input, shape index: {}]
  %s2 = inlined_call_operand.vmem [shape: f32[2,8,50], index: 2, kind: output, shape index: {}]
  %s3 = sld [smem:[#allocation0]]
  $region45: #{_ppm_forward_impl.2} parent=0
    _
  %s5 = ssub.s32 1, %s3
  %s6 = scalar_select 0, %s5, %s3
  loop: start=0, step=1, limit=4
  $region2: #{_ppm_forward_impl.2} parent=0 // loop_pre_header
    _
  $region3: #{_ppm_forward_impl.2} parent=0 // loop_header
    %s8 = sphi 0, %s12
    %p9 = scmp.ge.s32.totalorder %s8, 4
    %s15 = sphi 0, %s27
    %s16 = sphi 0, %s23
    %s17 = sphi 0, %s15
    %s18 = sphi 0, %s16
    %s19 = sphi 0, %s17
    %s20 = sphi 0, %s18
    %s32 = sphi 0, %s34
    %s35 = sphi 0, %s32
    %s36 = sphi 0, %s35
    %s52 = sphi 0, %s36
    %s58 = sphi 0, %s60
    %s61 = sphi 0, %s58
    %s62 = sphi 0, %s61
    %s78 = sphi 0, %s62
    %s82 = sphi 0, %s82
    %s84 = sphi 0, %s82
    %s85 = sphi 0, %s84
    %s99 = sphi 0, %s85
  $region4: #{_ppm_forward_impl.2} parent=0 // loop_header_branch
    %11 = sbr.rel (%p9) target = $region8
  $region5: #{_ppm_forward_impl.2} parent=0 // loop_body
    %s13 = ssub.s32 %s8, 1
    %s14 = ssub.s32 %s8, 2
    %s21 = sadd.s32 1, %s16
    %p22 = scmp.ge.s32.totalorder %s21, 2
    %s23 = scalar_select %p22, 0, %s21
    %s24 = sadd.s32 1, %s15
    %s25 = scalar_select %p22, %s24, %s15
    %p26 = scmp.ge.s32.totalorder %s25, 1
    %s27 = scalar_select %p26, 0, %s25
    %s28 = ssub.s32 %s16, %s23
    %s29 = ssub.s32 %s15, %s27
    %s30 = sor.u32 %s28, %s29
    %p31 = scmp.eq.s32.totalorder %s30, 0
    %s33 = sadd.s32 %s32, 1
    %s34 = scalar_select %p31, %s32, %s33
    %p37 = pneg %p31
    %p38 = scmp.eq.s32.totalorder %s8, 1
    %p39 = por %p37, %p38
    %p40 = scmp.ne.s32.totalorder %s32, %s35
    %p41 = scmp.eq.s32.totalorder %s8, 0
    %p42 = por %p40, %p41
    %p43 = scmp.ne.s32.totalorder %s32, %s35
    %p44 = scmp.eq.s32.totalorder %s13, 1
    %p45 = por %p43, %p44
    %p46 = scmp.ne.s32.totalorder %s35, %s36
    %p47 = scmp.eq.s32.totalorder %s13, 0
    %p48 = por %p46, %p47
    %p49 = scmp.ne.s32.totalorder %s35, %s36
    %p50 = scmp.eq.s32.totalorder %s14, 1
    %p51 = por %p49, %p50
    %p53 = scmp.ne.s32.totalorder %s36, %s52
    %p54 = scmp.eq.s32.totalorder %s14, 0
    %p55 = por %p53, %p54
    %s56 = ssub.s32 %s15, %s27
    %p57 = scmp.eq.s32.totalorder %s56, 0
    %s59 = sadd.s32 %s58, 1
    %s60 = scalar_select %p57, %s58, %s59
    %p63 = pneg %p57
    %p64 = scmp.eq.s32.totalorder %s8, 1
    %p65 = por %p63, %p64
    %p66 = scmp.ne.s32.totalorder %s58, %s61
    %p67 = scmp.eq.s32.totalorder %s8, 0
    %p68 = por %p66, %p67
    %p69 = scmp.ne.s32.totalorder %s58, %s61
    %p70 = scmp.eq.s32.totalorder %s13, 1
    %p71 = por %p69, %p70
    %p72 = scmp.ne.s32.totalorder %s61, %s62
    %p73 = scmp.eq.s32.totalorder %s13, 0
    %p74 = por %p72, %p73
    %p75 = scmp.ne.s32.totalorder %s61, %s62
    %p76 = scmp.eq.s32.totalorder %s14, 1
    %p77 = por %p75, %p76
    %p79 = scmp.ne.s32.totalorder %s62, %s78
    %p80 = scmp.eq.s32.totalorder %s14, 0
    %p81 = por %p79, %p80
    %s83 = sadd.s32 %s82, 1
    %p86 = scmp.eq.s32.totalorder %s8, 1
    %p87 = scmp.ne.s32.totalorder %s82, %s84
    %p88 = scmp.eq.s32.totalorder %s8, 0
    %p89 = por %p87, %p88
    %p90 = scmp.ne.s32.totalorder %s82, %s84
    %p91 = scmp.eq.s32.totalorder %s13, 1
    %p92 = por %p90, %p91
    %p93 = scmp.ne.s32.totalorder %s84, %s85
    %p94 = scmp.eq.s32.totalorder %s13, 0
    %p95 = por %p93, %p94
    %p96 = scmp.ne.s32.totalorder %s84, %s85
    %p97 = scmp.eq.s32.totalorder %s14, 1
    %p98 = por %p96, %p97
    %p100 = scmp.ne.s32.totalorder %s85, %s99
    %p101 = scmp.eq.s32.totalorder %s14, 0
    %p102 = por %p100, %p101
    %p103 = scmp.le.s32.totalorder 1, %s8
    %p104 = scmp.lt.s32.totalorder %s8, 3
    %p105 = pnand %p103, %p104
    %p106 = pneg %p105
    // Predicated region
    $region9: #{_ppm_forward_impl.2} parent=5 // pred_check
      _
    $region10: #{_ppm_forward_impl.2} parent=5 // pred_check_branch
      %108 = sbr.rel (%p105) target = $region12
    $region11: #{_ppm_forward_impl.2} parent=5 // pred_region
      %s109 = ssub.s32 %s8, 1
      // Predicated region
      $region13: #{_ppm_forward_impl.2} parent=11 // pred_check
        %p110 = pneg %p74
      $region14: #{_ppm_forward_impl.2} parent=11 // pred_check_branch
        %112 = sbr.rel (%p110) target = $region16
      $region15: #{_ppm_forward_impl.2} parent=11 // pred_region
        %s113 = smul.u32 32, %s17
        %p114 = scmp.lt.s32.totalorder %s113, 31
        %s115 = scalar_select %p114, %s113, 31
        %s116 = smul.addr %s115, 8
        %s117 = scalar_lea.vmem %s1, %s116
        %s118 = smul.u32 32, %s17
      $region16: #{_ppm_forward_impl.2} parent=11 // pred_fallthru
        _
    $region12: #{_ppm_forward_impl.2} parent=5 // pred_fallthru
      _
    %p119 = scmp.lt.s32.totalorder %s8, 2
    // Predicated region
    $region17: #{_ppm_forward_impl.2} parent=5 // pred_check
      %p120 = pneg %p119
    $region18: #{_ppm_forward_impl.2} parent=5 // pred_check_branch
      %122 = sbr.rel (%p120) target = $region20
    $region19: #{_ppm_forward_impl.2} parent=5 // pred_region
      // Predicated region
      $region21: #{_ppm_forward_impl.2} parent=19 // pred_check
        %p123 = pneg %p42
      $region22: #{_ppm_forward_impl.2} parent=19 // pred_check_branch
        %125 = sbr.rel (%p123) target = $region24
      $region23: #{_ppm_forward_impl.2} parent=19 // pred_region
        %s126 = smul.u32 2, %s15
        %p127 = scmp.lt.s32.totalorder %s16, 1
        %s128 = scalar_select %p127, %s16, 1
        %p129 = scmp.lt.s32.totalorder %s126, 1
        %s130 = scalar_select %p129, %s126, 1
        %s131 = smul.addr %s128, 2
        %s132 = sadd.s32 %s130, %s131
        %s133 = smul.addr %s132, 8
        %s134 = scalar_lea.vmem %s0, %s133
        %s135 = smul.u32 2, %s15
      $region24: #{_ppm_forward_impl.2} parent=19 // pred_fallthru
        _
    $region20: #{_ppm_forward_impl.2} parent=5 // pred_fallthru
      _
    %p136 = scmp.le.s32.totalorder 1, %s8
    %p137 = scmp.lt.s32.totalorder %s8, 3
    %p138 = pnand %p136, %p137
    %p139 = pneg %p138
    // Predicated region
    $region25: #{_ppm_forward_impl.2} parent=5 // pred_check
      _
    $region26: #{_ppm_forward_impl.2} parent=5 // pred_check_branch
      %141 = sbr.rel (%p138) target = $region28
    $region27: #{_ppm_forward_impl.2} parent=5 // pred_region
      %s142 = ssub.s32 %s8, 1
      %s143 = smul.u32 2, %s17
      %p144 = scmp.lt.s32.totalorder %s18, 1
      %s145 = scalar_select %p144, %s18, 1
      %p146 = scmp.lt.s32.totalorder %s143, 1
      %s147 = scalar_select %p146, %s143, 1
      %s148 = smul.addr %s145, 2
      %s149 = sadd.s32 %s147, %s148
      %s150 = smul.addr %s149, 8
      %s151 = scalar_lea.vmem %s0, %s150
      %p152 = pneg %p48
      %p153 = pneg %p45
      %s154 = smul.u32 32, %s17
      %p155 = scmp.lt.s32.totalorder %s154, 31
      %s156 = scalar_select %p155, %s154, 31
      %s157 = smul.addr %s156, 8
      %s158 = scalar_lea.vmem %s1, %s157
      %p159 = pneg %p74
      %p160 = pneg %p71
      %p161 = pneg %p95
      %p162 = pneg %p92
      %s163 = smul.u32 2, %s17
      %p164 = scmp.lt.s32.totalorder %s18, 1
      %s165 = scalar_select %p164, %s18, 1
      %p166 = scmp.lt.s32.totalorder %s163, 1
      %s167 = scalar_select %p166, %s163, 1
      %s168 = smul.addr %s165, 2
      %s169 = sadd.s32 %s167, %s168
      %s170 = smul.addr %s169, 8
      %s171 = scalar_lea.vmem %s0, %s170
      %s172 = smul.u32 2, %s17
      %s173 = smul.u32 32, %s17
      %p174 = scmp.lt.s32.totalorder %s173, 31
      %s175 = scalar_select %p174, %s173, 31
      %s176 = smul.addr %s175, 8
      %s177 = scalar_lea.vmem %s1, %s176
      %s178 = smul.u32 32, %s17
      %p179 = scmp.eq.s32.totalorder %s17, 0
      %p180 = scmp.eq.s32.totalorder %s18, 0
      %p181 = pnand %p179, %p180
      %p182 = pneg %p181
      // Predicated region
      $region29: #{_ppm_forward_impl.2} parent=27 // pred_check
        _
      $region30: #{_ppm_forward_impl.2} parent=27 // pred_check_branch
        %184 = sbr.rel (%p181) target = $region32
      $region31: #{_ppm_forward_impl.2} parent=27 // pred_region
        %vm185 = vcmask 408576
        %186 = vst.msk [vmem:[%s2] sm:$0xff] %vm185, 0.0
        %187 = vst.msk [vmem:[%s2 + $0x8] sm:$0xff] %vm185, 0.0
      $region32: #{_ppm_forward_impl.2} parent=27 // pred_fallthru
        _
      %v188 = vld [vmem:[%s171] sm:$0xff]
      %v189 = vld [vmem:[%s171 + $0x8] sm:$0xff]
      %s190 = smul.u32 %s18, 8
      %s191 = scalar_lea.vmem %s2, %s190
      %v192 = vld [vmem:[%s191] sm:$0xff]
      %v193 = vld [vmem:[%s177] sm:$0xff]
      %v194 = vld [vmem:[%s177 + $0x8] sm:$0xff]
      %v195 = vld [vmem:[%s177 + $0x10] sm:$0xff]
      %v196 = vld [vmem:[%s177 + $0x18] sm:$0xff]
      %v197 = vld [vmem:[%s177 + $0x20] sm:$0xff]
      %v198 = vld [vmem:[%s177 + $0x28] sm:$0xff]
      %v199 = vld [vmem:[%s177 + $0x30] sm:$0xff]
      %v200 = vld [vmem:[%s177 + $0x38] sm:$0xff]
      %v201 = vld [vmem:[%s177 + $0x40] sm:$0xff]
      %v202 = vld [vmem:[%s177 + $0x48] sm:$0xff]
      %v203 = vld [vmem:[%s177 + $0x50] sm:$0xff]
      %v204 = vld [vmem:[%s177 + $0x58] sm:$0xff]
      %v205 = vld [vmem:[%s177 + $0x60] sm:$0xff]
      %v206 = vld [vmem:[%s177 + $0x68] sm:$0xff]
      %v207 = vld [vmem:[%s177 + $0x70] sm:$0xff]
      %v208 = vld [vmem:[%s177 + $0x78] sm:$0xff]
      %v209 = vld [vmem:[%s177 + $0x80] sm:$0xff]
      %v210 = vld [vmem:[%s177 + $0x88] sm:$0xff]
      %v211 = vld [vmem:[%s177 + $0x90] sm:$0xff]
      %v212 = vld [vmem:[%s177 + $0x98] sm:$0xff]
      %v213 = vld [vmem:[%s177 + $0xa0] sm:$0xff]
      %v214 = vld [vmem:[%s177 + $0xa8] sm:$0xff]
      %v215 = vld [vmem:[%s177 + $0xb0] sm:$0xff]
      %v216 = vld [vmem:[%s177 + $0xb8] sm:$0xff]
      %v217 = vld [vmem:[%s177 + $0xc0] sm:$0xff]
      %v218 = vld [vmem:[%s177 + $0xc8] sm:$0xff]
      %v219 = vld [vmem:[%s177 + $0xd0] sm:$0xff]
      %v220 = vld [vmem:[%s177 + $0xd8] sm:$0xff]
      %v221 = vld [vmem:[%s177 + $0xe0] sm:$0xff]
      %v222 = vld [vmem:[%s177 + $0xe8] sm:$0xff]
      %v223 = vld [vmem:[%s177 + $0xf0] sm:$0xff]
      %v224 = vld [vmem:[%s177 + $0xf8] sm:$0xff]
      %225 = vmatprep.subr.mxu0 0.0
      %226 = vmatpush1.msra.mxu0 %v193
      %227 = vmatprep.subr.mxu0 0.0
      %228 = vmatpush1.msra.mxu0 %v194
      %229 = vmatprep.subr.mxu0 0.0
      %230 = vmatpush1.msra.mxu0 %v195
      %231 = vmatprep.subr.mxu0 0.0
      %232 = vmatpush1.msra.mxu0 %v196
      %233 = vmatprep.subr.mxu0 0.0
      %234 = vmatpush1.msra.mxu0 %v197
      %235 = vmatprep.subr.mxu0 0.0
      %236 = vmatpush1.msra.mxu0 %v198
      %237 = vmatprep.subr.mxu0 0.0
      %238 = vmatpush1.msra.mxu0 %v199
      %239 = vmatprep.subr.mxu0 0.0
      %240 = vmatpush1.msra.mxu0 %v200
      %241 = vmatprep.subr.mxu0 0.0
      %242 = vmatpush1.msra.mxu0 %v201
      %243 = vmatprep.subr.mxu0 0.0
      %244 = vmatpush1.msra.mxu0 %v202
      %245 = vmatprep.subr.mxu0 0.0
      %246 = vmatpush1.msra.mxu0 %v203
      %247 = vmatprep.subr.mxu0 0.0
      %248 = vmatpush1.msra.mxu0 %v204
      %249 = vmatprep.subr.mxu0 0.0
      %250 = vmatpush1.msra.mxu0 %v205
      %251 = vmatprep.subr.mxu0 0.0
      %252 = vmatpush1.msra.mxu0 %v206
      %253 = vmatprep.subr.mxu0 0.0
      %254 = vmatpush1.msra.mxu0 %v207
      %255 = vmatprep.subr.mxu0 0.0
      %256 = vmatpush1.msra.mxu0 %v208
      %257 = vmatprep.subr.mxu0 0.0
      %258 = vmatpush1.msra.mxu0 %v209
      %259 = vmatprep.subr.mxu0 0.0
      %260 = vmatpush1.msra.mxu0 %v210
      %261 = vmatprep.subr.mxu0 0.0
      %262 = vmatpush1.msra.mxu0 %v211
      %263 = vmatprep.subr.mxu0 0.0
      %264 = vmatpush1.msra.mxu0 %v212
      %265 = vmatprep.subr.mxu0 0.0
      %266 = vmatpush1.msra.mxu0 %v213
      %267 = vmatprep.subr.mxu0 0.0
      %268 = vmatpush1.msra.mxu0 %v214
      %269 = vmatprep.subr.mxu0 0.0
      %270 = vmatpush1.msra.mxu0 %v215
      %271 = vmatprep.subr.mxu0 0.0
      %272 = vmatpush1.msra.mxu0 %v216
      %273 = vmatprep.subr.mxu0 0.0
      %274 = vmatpush1.msra.mxu0 %v217
      %275 = vmatprep.subr.mxu0 0.0
      %276 = vmatpush1.msra.mxu0 %v218
      %277 = vmatprep.subr.mxu0 0.0
      %278 = vmatpush1.msra.mxu0 %v219
      %279 = vmatprep.subr.mxu0 0.0
      %280 = vmatpush1.msra.mxu0 %v220
      %281 = vmatprep.subr.mxu0 0.0
      %282 = vmatpush1.msra.mxu0 %v221
      %283 = vmatprep.subr.mxu0 0.0
      %284 = vmatpush1.msra.mxu0 %v222
      %285 = vmatprep.subr.mxu0 0.0
      %286 = vmatpush1.msra.mxu0 %v223
      %287 = vmatprep.subr.mxu0 0.0
      %288 = vmatpush1.msra.mxu0 %v224
      %289 = vmatprep.mubr.f32.mxu0 %v189
      %290 = vmatmul.mubr.f32.gmra.mrb[0].mxu0 %v188
      %v291 = vpop.f32.mrb[0].mxu0
      %v292 = vadd.f32 0.0, %v291
      %v293 = vpop.f32.mrb[0].mxu0
      %294 = vdwg.mxu0
      %v295 = vadd.f32 %v192, %v292
      %vm296 = vcmask 408576
      %297 = vst.msk [vmem:[%s191] sm:$0xff] %vm296, %v295
      // Predicated region
      $region33: #{_ppm_forward_impl.2} parent=27 // pred_check
        %p298 = pneg %p92
      $region34: #{_ppm_forward_impl.2} parent=27 // pred_check_branch
        %300 = sbr.rel (%p298) target = $region36
      $region35: #{_ppm_forward_impl.2} parent=27 // pred_region
        _
      $region36: #{_ppm_forward_impl.2} parent=27 // pred_fallthru
        _
      // Predicated region
      $region37: #{_ppm_forward_impl.2} parent=27 // pred_check
        %p301 = pneg %p92
      $region38: #{_ppm_forward_impl.2} parent=27 // pred_check_branch
        %303 = sbr.rel (%p301) target = $region40
      $region39: #{_ppm_forward_impl.2} parent=27 // pred_region
        _
      $region40: #{_ppm_forward_impl.2} parent=27 // pred_fallthru
        _
    $region28: #{_ppm_forward_impl.2} parent=5 // pred_fallthru
      _
    %p304 = scmp.le.s32.totalorder 2, %s8
    // Predicated region
    $region41: #{_ppm_forward_impl.2} parent=5 // pred_check
      %p305 = pneg %p304
    $region42: #{_ppm_forward_impl.2} parent=5 // pred_check_branch
      %307 = sbr.rel (%p305) target = $region44
    $region43: #{_ppm_forward_impl.2} parent=5 // pred_region
      %s308 = ssub.s32 %s8, 2
    $region44: #{_ppm_forward_impl.2} parent=5 // pred_fallthru
      _
  $region6: #{_ppm_forward_impl.2} parent=0 // loop_footer
    %s12 = sadd.s32 1, %s8
  $region7: #{_ppm_forward_impl.2} parent=0 // loop_footer_branch
    %7 = sbr.rel target = $region3
  $region8: #{_ppm_forward_impl.2} parent=0 // loop_exit
    _

</llo_original>
